<compile_context>
chip_gen: v6e
topology: v6e:2x2x1
jax: 0.10.0
libtpu: 0.0.40
codegen_flags: <defaults>
</compile_context>

<pallas_src>
import jax
import jax.numpy as jnp
from jax.experimental import pallas as pl
from jax.experimental.pallas import tpu as pltpu


# ---------------------------------------------------------------------------
# Tunables.
# ---------------------------------------------------------------------------
_MAX_LANES = 16384                       # lane width cap (multiple of 128)
_BLOCK_BYTES_BUDGET = 8 * 1024 * 1024    # per-block bytes; x4 (in+out, 2 bufs) = 32 MiB VMEM
_MIN_BLOCK_BYTES = 1 * 1024 * 1024       # never shrink blocks below this for grid widening
_TARGET_GRID_STEPS = 8                   # even, >= 8 so v7x shards the axis across both TCs
_DEFAULT_VMEM_LIMIT = 48 * 1024 * 1024   # safe on v5e/v6e (128 MiB) and v7x (64 MiB per TC)


def _cdiv(a: int, b: int) -> int:
    return -(-a // b)


def _copy_kernel(x_ref, o_ref):
    # Identity copy of the current (block_rows, lanes) tile — the only
    # "compute" Lin_View performs (moving every element into the new view).
    o_ref[...] = x_ref[...]


def _budgets():
    """(per-block byte budget, vmem_limit_bytes), generation-aware."""
    try:
        cap = int(pltpu.get_tpu_info().vmem_capacity_bytes)
        vmem_limit = int(min(64 * 1024 * 1024, (cap * 3) // 4))  # 48 MiB v7x, 64 MiB v5e/v6e
    except Exception:
        vmem_limit = _DEFAULT_VMEM_LIMIT
    block_budget = min(_BLOCK_BYTES_BUDGET, max(1 * 1024 * 1024, vmem_limit // 6))
    return block_budget, vmem_limit


def _sublane_multiple(dtype) -> int:
    """Rows per fully-packed vreg column: 8 (f32), 16 (bf16), 32 (int8/fp8)."""
    itemsize = jnp.dtype(dtype).itemsize
    return 8 * max(1, 4 // itemsize)


def _choose_slab(n_elems: int, sublane_mult: int):
    """Factor n_elems into (rows, lanes) with lanes a multiple of 128 and,
    while it stays exact, rows a multiple of the dtype's sublane pack."""
    lanes = 128
    while (lanes * 2 <= _MAX_LANES
           and n_elems % (lanes * 2) == 0
           and (n_elems // (lanes * 2)) % sublane_mult == 0):
        lanes *= 2
    return n_elems // lanes, lanes


def _choose_block_rows(rows: int, lanes: int, itemsize: int,
                       sublane_mult: int, block_budget: int) -> int:
    """Largest sublane-dense row count that fits the byte budget.  block_rows
    need NOT divide rows — the ragged tail block is masked by Pallas."""
    row_bytes = lanes * itemsize
    budget_rows = max(1, block_budget // row_bytes)
    block_rows = min(rows, budget_rows)
    if block_rows >= sublane_mult:
        block_rows -= block_rows % sublane_mult  # dense sublanes => unmasked vst
    # Prefer ~_TARGET_GRID_STEPS even steps (v7x megacore) if blocks stay big.
    if _cdiv(rows, block_rows) < _TARGET_GRID_STEPS:
        cand = _cdiv(_cdiv(rows, _TARGET_GRID_STEPS), sublane_mult) * sublane_mult
        if sublane_mult <= cand < block_rows and cand * row_bytes >= _MIN_BLOCK_BYTES:
            block_rows = cand
    return block_rows


def _pallas_copy_slab(x_slab: jax.Array) -> jax.Array:
    """Copy a lane-dense (rows, lanes) slab through VMEM at the HBM roofline."""
    rows, lanes = x_slab.shape
    itemsize = jnp.dtype(x_slab.dtype).itemsize
    sublane_mult = _sublane_multiple(x_slab.dtype)
    block_budget, vmem_limit = _budgets()
    block_rows = _choose_block_rows(rows, lanes, itemsize, sublane_mult, block_budget)
    grid = (_cdiv(rows, block_rows),)
    nbytes = rows * lanes * itemsize
    return pl.pallas_call(
        _copy_kernel,
        out_shape=jax.ShapeDtypeStruct((rows, lanes), x_slab.dtype),
        grid_spec=pltpu.PrefetchScalarGridSpec(
            num_scalar_prefetch=0,
            grid=grid,
            in_specs=[pl.BlockSpec((block_rows, lanes), lambda i: (i, 0))],
            out_specs=pl.BlockSpec((block_rows, lanes), lambda i: (i, 0)),
        ),
        compiler_params=pltpu.CompilerParams(
            dimension_semantics=("parallel",),   # shards the copy across v7x's 2 TCs
            vmem_limit_bytes=vmem_limit,
        ),
        cost_estimate=pl.CostEstimate(
            flops=0, transcendentals=0, bytes_accessed=2 * nbytes),
    )(x_slab)


class LinView:
    """JAX/Pallas port of Lin_View(c, a, b)."""

    def __init__(self, c: int, a: int, b: int):
        self.c, self.a, self.b = c, a, b

    def __call__(self, x: jax.Array, *, copy_through_pallas: bool = True) -> jax.Array:
        c, a, b = self.c, self.a, self.b
        cab = c * a * b
        lead = x.shape[0] if x.ndim > 0 else 1
        # Mirror PyTorch's try/except on .view(): first try (N, c, a, b); if the
        # element count doesn't work out, fall back to (1, c, a, b).
        if lead * cab == x.size:
            batch = lead
        elif x.size == cab:
            batch = 1
        else:
            raise ValueError("input size incompatible with (c, a, b)")

        if not copy_through_pallas or x.size == 0:
            # Truly optimal path: reshape is metadata-only, zero HBM traffic.
            # TODO(synk): torch .view aliases storage; the Pallas path below
            # intentionally materializes a copy instead.
            return jnp.reshape(x, (batch, c, a, b))

        n = int(x.size)
        sublane_mult = _sublane_multiple(x.dtype)
        flat = jnp.reshape(x, (n,))                     # glue: metadata only
        if n % 128 == 0:
            n_pad = n
        else:
            # Ragged total: pad to a fully dense multiple so >99% of the bytes
            # stay on the pipelined path (no whole-array VMEM block).
            pad_unit = sublane_mult * 128
            n_pad = _cdiv(n, pad_unit) * pad_unit
            flat = jnp.pad(flat, (0, n_pad - n))

        rows, lanes = _choose_slab(n_pad, sublane_mult)
        y_slab = _pallas_copy_slab(jnp.reshape(flat, (rows, lanes)))  # hot path
        y_flat = jnp.reshape(y_slab, (n_pad,))
        if n_pad != n:
            y_flat = y_flat[:n]
        return jnp.reshape(y_flat, (batch, c, a, b))    # glue: metadata only


if __name__ == "__main__":
    key = jax.random.PRNGKey(0)
    N, C, A, B = 2, 4, 16, 16
    # Typical usage: output of a linear layer, shape (N, c*a*b).
    x = jax.random.normal(key, (N, C * A * B), dtype=jnp.float32)

    lin_view = LinView(C, A, B)
    y = jax.block_until_ready(lin_view(x))              # Pallas copy path

    ref = jnp.reshape(x, (N, C, A, B))
    assert y.shape == (N, C, A, B), y.shape
    assert y.dtype == x.dtype
    assert bool(jnp.array_equal(y, ref))

    # Zero-copy path (recommended in production) must match too.
    y0 = jax.block_until_ready(lin_view(x, copy_through_pallas=False))
    assert bool(jnp.array_equal(y0, ref))

    # PyTorch's except-branch: element count only fits (1, c, a, b).
    x1 = jax.random.normal(jax.random.PRNGKey(0), (C * A * B,), dtype=jnp.float32)
    y1 = jax.block_until_ready(LinView(C, A, B)(x1))
    assert bool(jnp.array_equal(y1, jnp.reshape(x1, (1, C, A, B))))

    print("KERNEL_OK")
</pallas_src>

<mosaic_0001>
module attributes {stable_mosaic.version = 11 : i64} {
  func.func @_copy_kernel(%arg0: i32, %arg1: memref<8x256xf32, #tpu.memory_space<vmem>>, %arg2: memref<8x256xf32, #tpu.memory_space<vmem>>) attributes {dimension_semantics = [#tpu.dimension_semantics<parallel>], iteration_bounds = array<i64: 1>, scalar_prefetch = 0 : i64, scratch_operands = 0 : i64, tpu.core_type = #tpu.core_type<tc>, window_params = [{transform_indices = @transform_0, window_bounds = array<i64: 8, 256>}, {transform_indices = @transform_1, window_bounds = array<i64: 8, 256>}]} {
    %c0 = arith.constant 0 : index
    %c0_0 = arith.constant 0 : index
    %0 = vector.load %arg1[%c0, %c0_0] : memref<8x256xf32, #tpu.memory_space<vmem>>, vector<8x256xf32>
    %c0_1 = arith.constant 0 : index
    %c0_2 = arith.constant 0 : index
    %1 = vector.load %arg2[%c0_1, %c0_2] : memref<8x256xf32, #tpu.memory_space<vmem>>, vector<8x256xf32>
    tpu.vector_store %arg2[%c0_1, %c0_2], %0 {strides = array<i32>} : memref<8x256xf32, #tpu.memory_space<vmem>>, vector<8x256xf32>,
    return
  }
  func.func @transform_0(%arg0: i32) -> (i32, i32) {
    %c0_i32 = arith.constant 0 : i32
    %c0_i32_0 = arith.constant 0 : i32
    return %arg0, %c0_i32 : i32, i32
  }
  func.func @transform_1(%arg0: i32) -> (i32, i32) {
    %c0_i32 = arith.constant 0 : i32
    %c0_i32_0 = arith.constant 0 : i32
    return %arg0, %c0_i32 : i32, i32
  }
}

</mosaic_0001>

<llo_original>
// kernel: tpu_custom_call.1
$region0: #{tpu_custom_call.1}
  #allocation0 [shape = 'u32[]', space=smem, size = 0x4, offset = 0x4, fixed_abs, tag = 'smem constant byte address 0x4 - core index']
  #allocation1 [shape = 'u32[144,128]{1,0:T(1,128)}', space=vmem, size = 0x12000, scoped, tag = 'internal scratch']
  %s0 = inlined_call_operand.hbm [shape: f32[8,256], index: 0, kind: input, shape index: {}]
  %s1 = inlined_call_operand.hbm [shape: f32[8,256], index: 1, kind: output, shape index: {}]
  %s2 = sld [smem:[#allocation0]]
  $region18: #{tpu_custom_call.1} parent=0
    _
  %s4 = ssub.s32 1, %s2
  %s5 = scalar_select 0, %s4, %s2
  $region1: #{tpu_custom_call.1} parent=0
    #allocation2 [shape = 'u8[8192]{0}', space=vmem, size = 0x2000, scoped, tag = 'input window, operand 0, single buffered']
    #allocation3 [shape = 's32[1]{0}', space=sflag, size = 0x4, scoped, tag = 'scoped memory for tpu_custom_call.1']
    #allocation4 [shape = 's32[1]{0}', space=sflag, size = 0x4, scoped, tag = 'scoped memory for tpu_custom_call.1']
    #allocation5 [shape = 'u8[8192]{0}', space=vmem, size = 0x2000, scoped, tag = 'output window, operand 0, single buffered']
    %6 = vsyncpa [#allocation3], 0
    %7 = vsyncpa [#allocation4], 0
    // Predicated region
    $region2: #{tpu_custom_call.1} parent=1 // pred_check
      _
    $region3: #{tpu_custom_call.1} parent=1 // pred_check_branch
      %9 = sbr.rel (0) target = $region5
    $region4: #{tpu_custom_call.1} parent=1 // pred_region
      %s11 = ssub.s32 256, 256
      %12 = vsyncadd [#allocation3], %s11
      %s14 = sshll.u32 [#allocation2], 4
      %s15 = int_to_ptr.vmem [resolvable:$true] %s14
      %17 = dma.hbm_to_vmem [thread:$0]  %s0, 256, %s15, [#allocation3]
    $region5: #{tpu_custom_call.1} parent=1 // pred_fallthru
      _
    // Predicated region
    $region6: #{tpu_custom_call.1} parent=1 // pred_check
      _
    $region7: #{tpu_custom_call.1} parent=1 // pred_check_branch
      %19 = sbr.rel (0) target = $region9
    $region8: #{tpu_custom_call.1} parent=1 // pred_region
      %20 = dma.done [#allocation3], 256
    $region9: #{tpu_custom_call.1} parent=1 // pred_fallthru
      _
    %v21 = vld [vmem:[#allocation2] sm:$0xff]
    %v22 = vld [vmem:[#allocation2 + $0x8] sm:$0xff]
    %23 = vst [vmem:[#allocation5] sm:$0xff] %v21
    %24 = vst [vmem:[#allocation5 + $0x8] sm:$0xff] %v22
    // Predicated region
    $region10: #{tpu_custom_call.1} parent=1 // pred_check
      _
    $region11: #{tpu_custom_call.1} parent=1 // pred_check_branch
      %26 = sbr.rel (0) target = $region13
    $region12: #{tpu_custom_call.1} parent=1 // pred_region
      %s28 = ssub.s32 256, 256
      %29 = vsyncadd [#allocation4], %s28
      %s31 = sshll.u32 [#allocation5], 4
      %s32 = int_to_ptr.vmem [resolvable:$true] %s31
      %34 = dma.vmem_to_hbm [thread:$0]  %s32, 256, %s1, [#allocation4]
    $region13: #{tpu_custom_call.1} parent=1 // pred_fallthru
      _
    // Predicated region
    $region14: #{tpu_custom_call.1} parent=1 // pred_check
      _
    $region15: #{tpu_custom_call.1} parent=1 // pred_check_branch
      %36 = sbr.rel (0) target = $region17
    $region16: #{tpu_custom_call.1} parent=1 // pred_region
      %37 = dma.done [#allocation4], 256
    $region17: #{tpu_custom_call.1} parent=1 // pred_fallthru
      _
    %38 = vsyncpa [#allocation3], 1
    %39 = vsyncpa [#allocation4], 1

</llo_original>
